<compile_context>
chip_gen: v5e
topology: v5e:2x2
jax: 0.10.0
libtpu: 0.0.40
codegen_flags: <defaults>
</compile_context>

<pallas_src>
import functools
import math

import jax
import jax.numpy as jnp
import numpy as np
from jax.experimental import pallas as pl
from jax.experimental.pallas import tpu as pltpu


# ---------------------------------------------------------------------------
# Pallas kernel: one batch TILE (tb rows) per grid step.
# ---------------------------------------------------------------------------
def attn_kernel(dec_ref, enc_ref, wq_ref, wkv_ref, wo_ref, bo_ref,
                hsel_ref, hexp_ref, out_ref, attn_ref, *,
                num_heads, tb, seq, inv_scale):
    Dd = wq_ref.shape[1]
    rows = tb * seq

    # ---- projections (MXU, f32 accumulation). 1/sqrt(head_dim) folded into q.
    q = jnp.dot(dec_ref[...], wq_ref[...],
                preferred_element_type=jnp.float32) * inv_scale            # (tb, Dd)
    # Fused K|V projection: the (tb*S, E2) enc block goes through the MXU once
    # against the concatenated (E2, 2*Dd) RHS, then k/v split by static lane
    # slices.  (Wrapper keeps 2*Dd small for these shapes; see TODO there.)
    kv = jnp.dot(enc_ref[...], wkv_ref[...],
                 preferred_element_type=jnp.float32)                       # (tb*S, 2*Dd)
    k = kv[:, :Dd]
    v = kv[:, Dd:]

    # ---- per-head scores, kept lane-dense in Dd ------------------------------
    # q broadcast over the S key rows is fused into the multiply (no
    # materialized (tb*S, Dd) q replica); the hd-lane -> head reduction runs on
    # the MXU via the 0/1 indicator matrix.  (seq=8 keeps the (tb,seq,Dd)
    # reshapes sublane-aligned for f32.)
    kq = (k.reshape(tb, seq, Dd) * q[:, None, :]).reshape(rows, Dd)
    scores = jnp.dot(kq.astype(hsel_ref.dtype), hsel_ref[...],
                     preferred_element_type=jnp.float32)                   # (tb*S, H)
    scores = scores.reshape(tb, seq, num_heads)                            # (tb, S, H)

    # ---- softmax over keys (axis=1), f32 -------------------------------------
    # TODO(synk): optional `mask` argument of the module is not implemented
    # (module default mask=None path only).
    m = scores.max(axis=1, keepdims=True)
    e = jnp.exp(scores - m)
    denom = e.sum(axis=1, keepdims=True)
    # approx reciprocal runs on the otherwise-idle EUP slot; ~2e-4 relative
    # error, so returned weights sum to 1 only approximately.
    w = e * pl.reciprocal(denom, approx=True)                              # (tb, S, H)

    # ---- context: expand head weights back to Dd lanes on the MXU ------------
    w_flat = w.reshape(rows, num_heads)
    w_exp = jnp.dot(w_flat.astype(hexp_ref.dtype), hexp_ref[...],
                    preferred_element_type=jnp.float32)                    # (tb*S, Dd)
    ctx = (w_exp * v).reshape(tb, seq, Dd).sum(axis=1)                     # (tb, Dd)

    # ---- output projection + bias; whole-slab (tb, Dd)/(tb, S) stores --------
    out_ref[...] = (jnp.dot(ctx.astype(wo_ref.dtype), wo_ref[...],
                            preferred_element_type=jnp.float32)
                    + bo_ref[...])                                         # (tb, Dd)
    # Mean over heads: small lane reduce over H lanes (XLU is idle here).
    attn_ref[...] = jnp.mean(w, axis=-1)                                   # (tb, S)


# ---------------------------------------------------------------------------
# Tiling helpers
# ---------------------------------------------------------------------------
def _vmem_capacity_bytes():
    try:
        cap = getattr(pltpu.get_tpu_info(), "vmem_capacity_bytes", None)
        if cap:
            return int(cap)
    except Exception:
        pass
    return 64 * 1024 * 1024   # v7x per-core capacity -- conservative default


def _pick_batch_tile(B, per_row_bytes, budget_bytes):
    """Largest multiple-of-8 divisor of B that fits the VMEM budget (capped at
    1024 rows), preferring >= 2 grid steps so the 'parallel' axis can shard
    across v7x's two TensorCores (near-free on single-TC v5e/v6e)."""
    if B <= 8:
        return B
    cap = int(budget_bytes // max(per_row_bytes, 1))
    cap = max(8, min(cap, 1024, B))
    tb = None
    t = (cap // 8) * 8
    while t >= 8:
        if B % t == 0:
            tb = t
            break
        t -= 8
    if tb is None:
        # TODO(synk): pad the batch if B has no multiple-of-8 divisor and the
        # full batch exceeds the VMEM budget; fine for the shapes used here.
        return B
    if tb == B and (B // 2) % 8 == 0:
        tb = B // 2
    return tb


# ---------------------------------------------------------------------------
# Wrapper: parameter plumbing + pallas_call
# ---------------------------------------------------------------------------
def attention_forward(decoder_hidden, encoder_outputs, params, num_heads, *,
                      batch_tile=None, compute_dtype=jnp.bfloat16):
    if decoder_hidden.ndim == 3:          # (num_layers, B, Dd) -> take last layer
        decoder_hidden = decoder_hidden[-1]

    B, S, E2 = encoder_outputs.shape
    Dd = params["wq"].shape[0]
    H = num_heads
    assert Dd % H == 0, "decoder_dim must be divisible by num_heads"
    head_dim = Dd // H
    inv_scale = 1.0 / math.sqrt(head_dim)
    itemsize = jnp.dtype(compute_dtype).itemsize

    # torch.nn.Linear weights are (out, in); transpose so the kernel does x @ W.
    wq_t = params["wq"].T.astype(compute_dtype)                            # (Dd, Dd)
    wkv_t = jnp.concatenate([params["wk"].T, params["wv"].T],
                            axis=1).astype(compute_dtype)                  # (E2, 2*Dd)
    wo_t = params["wo"].T.astype(compute_dtype)                            # (Dd, Dd)
    bo = params["bo"].reshape(1, Dd).astype(jnp.float32)
    # TODO(synk): on v5e, if 2*Dd ever exceeds 128 split the fused K|V RHS back
    # into two dots (MXU N-width); irrelevant at these shapes (2*Dd = 64).

    # Exact 0/1 head maps: hsel sums each head's hd lanes into one score lane;
    # hexp broadcasts one head weight back across its hd lanes.  Stored in
    # compute_dtype so the indicator matmuls run at full bf16 MXU rate.
    head_of_lane = jnp.arange(Dd, dtype=jnp.int32) // head_dim
    hsel = (head_of_lane[:, None] == jnp.arange(H, dtype=jnp.int32)[None, :]
            ).astype(compute_dtype)                                        # (Dd, H)
    hexp = hsel.T                                                          # (H, Dd)

    dec = decoder_hidden.astype(compute_dtype)                             # (B, Dd)
    enc = encoder_outputs.reshape(B * S, E2).astype(compute_dtype)         # (B*S, E2)

    # ---- VMEM-budget-derived batch tile & scoped-vmem limit -----------------
    per_row = (2 * itemsize * (Dd + S * E2)              # double-buffered dec/enc
               + 4 * (2 * Dd + 4 * S * Dd + 4 * S * H)   # f32 intermediates
               + itemsize * S * (Dd + H)                 # bf16 casts for indicator dots
               + 2 * 4 * (Dd + S))                       # double-buffered outputs
    weight_bytes = itemsize * (2 * Dd * Dd + 2 * E2 * Dd + 2 * Dd * H) + 4 * Dd
    vmem_cap = _vmem_capacity_bytes()
    budget = int(vmem_cap * 0.6) - weight_bytes
    tb = _pick_batch_tile(B, per_row, budget) if batch_tile is None else batch_tile
    assert B % tb == 0, "batch_tile must divide the batch"
    grid = (B // tb,)
    vmem_limit = int(min(vmem_cap,
                         max(32 * 1024 * 1024,
                             weight_bytes + per_row * tb + (2 << 20))))

    kernel = functools.partial(attn_kernel, num_heads=H, tb=tb, seq=S,
                               inv_scale=inv_scale)

    flops = (2 * B * Dd * Dd                # q proj
             + 2 * B * S * E2 * 2 * Dd      # fused k/v proj
             + 4 * B * S * Dd * H           # indicator dots
             + 2 * B * Dd * Dd              # out proj
             + 8 * B * S * H + 4 * B * S * Dd)
    cost = pl.CostEstimate(
        flops=int(flops),
        transcendentals=int(B * S * H + B * H),
        bytes_accessed=int(itemsize * (B * Dd + B * S * E2) + weight_bytes
                           + 4 * (B * Dd + B * S)),
    )

    def _call(single_buffer_weights):
        def inv_spec(shape):
            idx = lambda b: (0,) * len(shape)
            if single_buffer_weights:
                # Grid-invariant blocks: skip pointless double-buffering.
                return pl.BlockSpec(shape, idx, pipeline_mode=pl.Buffered(1))
            return pl.BlockSpec(shape, idx)

        return pl.pallas_call(
            kernel,
            out_shape=(
                jax.ShapeDtypeStruct((B, Dd), jnp.float32),
                jax.ShapeDtypeStruct((B, S), jnp.float32),
            ),
            grid=grid,
            in_specs=[
                pl.BlockSpec((tb, Dd), lambda b: (b, 0)),        # decoder rows
                pl.BlockSpec((tb * S, E2), lambda b: (b, 0)),    # encoder rows (B*S, E2)
                inv_spec((Dd, Dd)),                              # Wq^T
                inv_spec((E2, 2 * Dd)),                          # [Wk | Wv]^T fused
                inv_spec((Dd, Dd)),                              # Wo^T
                inv_spec((1, Dd)),                               # bo
                inv_spec((Dd, H)),                               # head-select (0/1)
                inv_spec((H, Dd)),                               # head-expand (0/1)
            ],
            out_specs=(
                # NOTE: last dims (Dd=32, S=8) are below 128 lanes -> masked
                # partial stores, amortized by the large batch tile.  A fully
                # lane-dense (grid, tb*Dd) slab would need an in-kernel
                # relayout; deferred pending measurement.
                pl.BlockSpec((tb, Dd), lambda b: (b, 0)),
                pl.BlockSpec((tb, S), lambda b: (b, 0)),
            ),
            compiler_params=pltpu.CompilerParams(
                dimension_semantics=("parallel",),
                vmem_limit_bytes=vmem_limit),
            cost_estimate=cost,
        )(dec, enc, wq_t, wkv_t, wo_t, bo, hsel, hexp)

    try:
        return _call(True)
    except Exception:
        # pipeline_mode=pl.Buffered(1) unsupported on this jax/libtpu build;
        # fall back to default double-buffering of the invariant blocks.
        return _call(False)


# ---------------------------------------------------------------------------
# Pure-JAX reference (mirrors the PyTorch forward exactly, f32)
# ---------------------------------------------------------------------------
def reference_forward(decoder_hidden, encoder_outputs, params, num_heads):
    if decoder_hidden.ndim == 3:
        decoder_hidden = decoder_hidden[-1]
    B, S, _ = encoder_outputs.shape
    Dd = params["wq"].shape[0]
    hd = Dd // num_heads
    scale = math.sqrt(hd)

    q = decoder_hidden @ params["wq"].T                       # (B, Dd)
    k = encoder_outputs @ params["wk"].T                      # (B, S, Dd)
    v = encoder_outputs @ params["wv"].T                      # (B, S, Dd)

    q = q.reshape(B, 1, num_heads, hd).transpose(0, 2, 1, 3)  # (B, H, 1, hd)
    k = k.reshape(B, S, num_heads, hd).transpose(0, 2, 1, 3)  # (B, H, S, hd)
    v = v.reshape(B, S, num_heads, hd).transpose(0, 2, 1, 3)  # (B, H, S, hd)

    scores = jnp.einsum("bhqd,bhkd->bhqk", q, k) / scale      # (B, H, 1, S)
    w = jax.nn.softmax(scores, axis=-1)
    ctx = jnp.einsum("bhqk,bhkd->bhqd", w, v)                 # (B, H, 1, hd)
    ctx = ctx.transpose(0, 2, 1, 3).reshape(B, Dd)
    out = ctx @ params["wo"].T + params["bo"]
    attn = w.squeeze(2).mean(axis=1)                          # (B, S)
    return out, attn


# ---------------------------------------------------------------------------
def init_params(key, encoder_dim, decoder_dim):
    e2 = encoder_dim * 2
    ks = jax.random.split(key, 5)

    def lin(k, fan_in, shape):
        bound = 1.0 / math.sqrt(fan_in)
        return jax.random.uniform(k, shape, jnp.float32, -bound, bound)

    return {
        "wq": lin(ks[0], decoder_dim, (decoder_dim, decoder_dim)),
        "wk": lin(ks[1], e2, (decoder_dim, e2)),
        "wv": lin(ks[2], e2, (decoder_dim, e2)),
        "wo": lin(ks[3], decoder_dim, (decoder_dim, decoder_dim)),
        "bo": lin(ks[4], decoder_dim, (decoder_dim,)),
    }


if __name__ == "__main__":
    # Small, module-consistent shapes.
    batch = 2
    seq = 8
    encoder_dim = 16          # encoder_outputs feature dim is 2*encoder_dim = 32
    decoder_dim = 32
    num_heads = 8             # head_dim = 4

    key = jax.random.PRNGKey(0)
    k_dec, k_enc, k_par = jax.random.split(key, 3)

    decoder_hidden = jax.random.normal(k_dec, (batch, decoder_dim), jnp.float32)
    encoder_outputs = jax.random.normal(k_enc, (batch, seq, 2 * encoder_dim), jnp.float32)
    params = init_params(k_par, encoder_dim, decoder_dim)

    ref_out, ref_attn = reference_forward(decoder_hidden, encoder_outputs, params, num_heads)

    # f32 path: tight check of the kernel math (only approx-reciprocal noise).
    out32, attn32 = attention_forward(decoder_hidden, encoder_outputs, params,
                                      num_heads, compute_dtype=jnp.float32)
    out32 = jax.block_until_ready(out32)
    attn32 = jax.block_until_ready(attn32)
    np.testing.assert_allclose(np.asarray(out32), np.asarray(ref_out), rtol=5e-3, atol=5e-3)
    np.testing.assert_allclose(np.asarray(attn32), np.asarray(ref_attn), rtol=5e-3, atol=5e-3)

    # Default fast path: bf16 MXU operands, f32 accumulation/softmax
    # (tolerance reflects bf16 matmul inputs).
    out, attn = attention_forward(decoder_hidden, encoder_outputs, params, num_heads)
    out = jax.block_until_ready(out)
    attn = jax.block_until_ready(attn)
    np.testing.assert_allclose(np.asarray(out), np.asarray(ref_out), rtol=5e-2, atol=5e-2)
    np.testing.assert_allclose(np.asarray(attn), np.asarray(ref_attn), rtol=5e-2, atol=5e-2)

    print("KERNEL_OK")
</pallas_src>

<mosaic_0001>
module attributes {stable_mosaic.version = 11 : i64} {
  func.func @attn_kernel(%arg0: i32, %arg1: memref<2x32xf32, #tpu.memory_space<vmem>>, %arg2: memref<16x32xf32, #tpu.memory_space<vmem>>, %arg3: memref<32x32xf32, #tpu.memory_space<vmem>>, %arg4: memref<32x64xf32, #tpu.memory_space<vmem>>, %arg5: memref<32x32xf32, #tpu.memory_space<vmem>>, %arg6: memref<1x32xf32, #tpu.memory_space<vmem>>, %arg7: memref<32x8xf32, #tpu.memory_space<vmem>>, %arg8: memref<8x32xf32, #tpu.memory_space<vmem>>, %arg9: memref<2x32xf32, #tpu.memory_space<vmem>>, %arg10: memref<2x8xf32, #tpu.memory_space<vmem>>) attributes {dimension_semantics = [#tpu.dimension_semantics<parallel>], iteration_bounds = array<i64: 1>, scalar_prefetch = 0 : i64, scratch_operands = 0 : i64, tpu.core_type = #tpu.core_type<tc>, window_params = [{transform_indices = @transform_0, window_bounds = array<i64: 2, 32>}, {transform_indices = @transform_1, window_bounds = array<i64: 16, 32>}, {pipeline_mode = #tpu.pipeline_mode<synchronous>, transform_indices = @transform_2, window_bounds = array<i64: 32, 32>}, {pipeline_mode = #tpu.pipeline_mode<synchronous>, transform_indices = @transform_3, window_bounds = array<i64: 32, 64>}, {pipeline_mode = #tpu.pipeline_mode<synchronous>, transform_indices = @transform_4, window_bounds = array<i64: 32, 32>}, {pipeline_mode = #tpu.pipeline_mode<synchronous>, transform_indices = @transform_5, window_bounds = array<i64: 1, 32>}, {pipeline_mode = #tpu.pipeline_mode<synchronous>, transform_indices = @transform_6, window_bounds = array<i64: 32, 8>}, {pipeline_mode = #tpu.pipeline_mode<synchronous>, transform_indices = @transform_7, window_bounds = array<i64: 8, 32>}, {transform_indices = @transform_8, window_bounds = array<i64: 2, 32>}, {transform_indices = @transform_9, window_bounds = array<i64: 2, 8>}]} {
    %c0 = arith.constant 0 : index
    %c0_0 = arith.constant 0 : index
    %0 = vector.load %arg1[%c0, %c0_0] : memref<2x32xf32, #tpu.memory_space<vmem>>, vector<2x32xf32>
    %c0_1 = arith.constant 0 : index
    %c0_2 = arith.constant 0 : index
    %1 = vector.load %arg3[%c0_1, %c0_2] : memref<32x32xf32, #tpu.memory_space<vmem>>, vector<32x32xf32>
    %cst = arith.constant dense<0.000000e+00> : vector<2x32xf32>
    %2 = tpu.matmul %0, %1, %cst {dimension_numbers = #tpu.dot_dimension_numbers<[1], [0], [0], [1], [0, 0, 1, 1], [], []>} : vector<2x32xf32>, vector<32x32xf32>, vector<2x32xf32> -> vector<2x32xf32>
    %cst_3 = arith.constant 5.000000e-01 : f32
    %3 = vector.broadcast %cst_3 : f32 to vector<2x32xf32>
    %4 = arith.mulf %2, %3 : vector<2x32xf32>
    %c0_4 = arith.constant 0 : index
    %c0_5 = arith.constant 0 : index
    %5 = vector.load %arg2[%c0_4, %c0_5] : memref<16x32xf32, #tpu.memory_space<vmem>>, vector<16x32xf32>
    %c0_6 = arith.constant 0 : index
    %c0_7 = arith.constant 0 : index
    %6 = vector.load %arg4[%c0_6, %c0_7] : memref<32x64xf32, #tpu.memory_space<vmem>>, vector<32x64xf32>
    %cst_8 = arith.constant dense<0.000000e+00> : vector<16x64xf32>
    %7 = tpu.matmul %5, %6, %cst_8 {dimension_numbers = #tpu.dot_dimension_numbers<[1], [0], [0], [1], [0, 0, 1, 1], [], []>} : vector<16x32xf32>, vector<32x64xf32>, vector<16x64xf32> -> vector<16x64xf32>
    %8 = vector.extract_strided_slice %7 {offsets = [0, 0], sizes = [16, 32], strides = [1, 1]} : vector<16x64xf32> to vector<16x32xf32>
    %9 = vector.extract_strided_slice %7 {offsets = [0, 32], sizes = [16, 32], strides = [1, 1]} : vector<16x64xf32> to vector<16x32xf32>
    %10 = vector.shape_cast %8 : vector<16x32xf32> to vector<2x8x32xf32>
    %11 = vector.shape_cast %4 : vector<2x32xf32> to vector<2x1x32xf32>
    %12 = vector.broadcast %11 : vector<2x1x32xf32> to vector<2x8x32xf32>
    %13 = arith.mulf %10, %12 : vector<2x8x32xf32>
    %14 = vector.shape_cast %13 : vector<2x8x32xf32> to vector<16x32xf32>
    %c0_9 = arith.constant 0 : index
    %c0_10 = arith.constant 0 : index
    %15 = vector.load %arg7[%c0_9, %c0_10] : memref<32x8xf32, #tpu.memory_space<vmem>>, vector<32x8xf32>
    %cst_11 = arith.constant dense<0.000000e+00> : vector<16x8xf32>
    %16 = tpu.matmul %14, %15, %cst_11 {dimension_numbers = #tpu.dot_dimension_numbers<[1], [0], [0], [1], [0, 0, 1, 1], [], []>} : vector<16x32xf32>, vector<32x8xf32>, vector<16x8xf32> -> vector<16x8xf32>
    %17 = vector.shape_cast %16 : vector<16x8xf32> to vector<2x8x8xf32>
    %cst_12 = arith.constant dense<0xFF800000> : vector<2x8xf32>
    %18 = vector.multi_reduction <maximumf>, %17, %cst_12 [1] : vector<2x8x8xf32> to vector<2x8xf32>
    %19 = vector.shape_cast %18 : vector<2x8xf32> to vector<2x1x8xf32>
    %20 = vector.broadcast %19 : vector<2x1x8xf32> to vector<2x8x8xf32>
    %21 = arith.subf %17, %20 : vector<2x8x8xf32>
    %22 = math.exp %21 : vector<2x8x8xf32>
    %cst_13 = arith.constant dense<0.000000e+00> : vector<2x8xf32>
    %23 = vector.multi_reduction <add>, %22, %cst_13 [1] : vector<2x8x8xf32> to vector<2x8xf32>
    %24 = vector.shape_cast %23 : vector<2x8xf32> to vector<2x1x8xf32>
    %25 = tpu.reciprocal %24 {approx = true} : vector<2x1x8xf32> -> vector<2x1x8xf32>
    %26 = vector.broadcast %25 : vector<2x1x8xf32> to vector<2x8x8xf32>
    %27 = arith.mulf %22, %26 : vector<2x8x8xf32>
    %28 = vector.shape_cast %27 : vector<2x8x8xf32> to vector<16x8xf32>
    %c0_14 = arith.constant 0 : index
    %c0_15 = arith.constant 0 : index
    %29 = vector.load %arg8[%c0_14, %c0_15] : memref<8x32xf32, #tpu.memory_space<vmem>>, vector<8x32xf32>
    %cst_16 = arith.constant dense<0.000000e+00> : vector<16x32xf32>
    %30 = tpu.matmul %28, %29, %cst_16 {dimension_numbers = #tpu.dot_dimension_numbers<[1], [0], [0], [1], [0, 0, 1, 1], [], []>} : vector<16x8xf32>, vector<8x32xf32>, vector<16x32xf32> -> vector<16x32xf32>
    %31 = arith.mulf %30, %9 : vector<16x32xf32>
    %32 = vector.shape_cast %31 : vector<16x32xf32> to vector<2x8x32xf32>
    %cst_17 = arith.constant dense<0.000000e+00> : vector<2x32xf32>
    %33 = vector.multi_reduction <add>, %32, %cst_17 [1] : vector<2x8x32xf32> to vector<2x32xf32>
    %c0_18 = arith.constant 0 : index
    %c0_19 = arith.constant 0 : index
    %34 = vector.load %arg5[%c0_18, %c0_19] : memref<32x32xf32, #tpu.memory_space<vmem>>, vector<32x32xf32>
    %cst_20 = arith.constant dense<0.000000e+00> : vector<2x32xf32>
    %35 = tpu.matmul %33, %34, %cst_20 {dimension_numbers = #tpu.dot_dimension_numbers<[1], [0], [0], [1], [0, 0, 1, 1], [], []>} : vector<2x32xf32>, vector<32x32xf32>, vector<2x32xf32> -> vector<2x32xf32>
    %c0_21 = arith.constant 0 : index
    %c0_22 = arith.constant 0 : index
    %36 = vector.load %arg6[%c0_21, %c0_22] : memref<1x32xf32, #tpu.memory_space<vmem>>, vector<1x32xf32>
    %37 = vector.broadcast %36 : vector<1x32xf32> to vector<2x32xf32>
    %38 = arith.addf %35, %37 : vector<2x32xf32>
    %c0_23 = arith.constant 0 : index
    %c0_24 = arith.constant 0 : index
    %39 = vector.load %arg9[%c0_23, %c0_24] : memref<2x32xf32, #tpu.memory_space<vmem>>, vector<2x32xf32>
    tpu.vector_store %arg9[%c0_23, %c0_24], %38 {strides = array<i32>} : memref<2x32xf32, #tpu.memory_space<vmem>>, vector<2x32xf32>,
    %cst_25 = arith.constant dense<0.000000e+00> : vector<2x8xf32>
    %40 = vector.multi_reduction <add>, %27, %cst_25 [2] : vector<2x8x8xf32> to vector<2x8xf32>
    %cst_26 = arith.constant 8.000000e+00 : f32
    %41 = vector.broadcast %cst_26 : f32 to vector<2x8xf32>
    %42 = arith.divf %40, %41 : vector<2x8xf32>
    %c0_27 = arith.constant 0 : index
    %c0_28 = arith.constant 0 : index
    %43 = vector.load %arg10[%c0_27, %c0_28] : memref<2x8xf32, #tpu.memory_space<vmem>>, vector<2x8xf32>
    tpu.vector_store %arg10[%c0_27, %c0_28], %42 {strides = array<i32>} : memref<2x8xf32, #tpu.memory_space<vmem>>, vector<2x8xf32>,
    return
  }
  func.func @transform_0(%arg0: i32) -> (i32, i32) {
    %c0_i32 = arith.constant 0 : i32
    %c0_i32_0 = arith.constant 0 : i32
    return %arg0, %c0_i32 : i32, i32
  }
  func.func @transform_1(%arg0: i32) -> (i32, i32) {
    %c0_i32 = arith.constant 0 : i32
    %c0_i32_0 = arith.constant 0 : i32
    return %arg0, %c0_i32 : i32, i32
  }
  func.func @transform_2(%arg0: i32) -> (i32, i32) {
    %c0_i32 = arith.constant 0 : i32
    %c0_i32_0 = arith.constant 0 : i32
    %c0_i32_1 = arith.constant 0 : i32
    return %c0_i32, %c0_i32_0 : i32, i32
  }
  func.func @transform_3(%arg0: i32) -> (i32, i32) {
    %c0_i32 = arith.constant 0 : i32
    %c0_i32_0 = arith.constant 0 : i32
    %c0_i32_1 = arith.constant 0 : i32
    return %c0_i32, %c0_i32_0 : i32, i32
  }
  func.func @transform_4(%arg0: i32) -> (i32, i32) {
    %c0_i32 = arith.constant 0 : i32
    %c0_i32_0 = arith.constant 0 : i32
    %c0_i32_1 = arith.constant 0 : i32
    return %c0_i32, %c0_i32_0 : i32, i32
  }
  func.func @transform_5(%arg0: i32) -> (i32, i32) {
    %c0_i32 = arith.constant 0 : i32
    %c0_i32_0 = arith.constant 0 : i32
    %c0_i32_1 = arith.constant 0 : i32
    return %c0_i32, %c0_i32_0 : i32, i32
  }
  func.func @transform_6(%arg0: i32) -> (i32, i32) {
    %c0_i32 = arith.constant 0 : i32
    %c0_i32_0 = arith.constant 0 : i32
    %c0_i32_1 = arith.constant 0 : i32
    return %c0_i32, %c0_i32_0 : i32, i32
  }
  func.func @transform_7(%arg0: i32) -> (i32, i32) {
    %c0_i32 = arith.constant 0 : i32
    %c0_i32_0 = arith.constant 0 : i32
    %c0_i32_1 = arith.constant 0 : i32
    return %c0_i32, %c0_i32_0 : i32, i32
  }
  func.func @transform_8(%arg0: i32) -> (i32, i32) {
    %c0_i32 = arith.constant 0 : i32
    %c0_i32_0 = arith.constant 0 : i32
    return %arg0, %c0_i32 : i32, i32
  }
  func.func @transform_9(%arg0: i32) -> (i32, i32) {
    %c0_i32 = arith.constant 0 : i32
    %c0_i32_0 = arith.constant 0 : i32
    return %arg0, %c0_i32 : i32, i32
  }
}

module attributes {stable_mosaic.version = 11 : i64} {
  func.func @attn_kernel(%arg0: i32, %arg1: memref<2x32xf32, #tpu.memory_space<vmem>>, %arg2: memref<16x32xf32, #tpu.memory_space<vmem>>, %arg3: memref<32x32xf32, #tpu.memory_space<vmem>>, %arg4: memref<32x64xf32, #tpu.memory_space<vmem>>, %arg5: memref<32x32xf32, #tpu.memory_space<vmem>>, %arg6: memref<1x32xf32, #tpu.memory_space<vmem>>, %arg7: memref<32x8xf32, #tpu.memory_space<vmem>>, %arg8: memref<8x32xf32, #tpu.memory_space<vmem>>, %arg9: memref<2x32xf32, #tpu.memory_space<vmem>>, %arg10: memref<2x8xf32, #tpu.memory_space<vmem>>) attributes {dimension_semantics = [#tpu.dimension_semantics<parallel>], iteration_bounds = array<i64: 1>, scalar_prefetch = 0 : i64, scratch_operands = 0 : i64, tpu.core_type = #tpu.core_type<tc>, window_params = [{transform_indices = @transform_0, window_bounds = array<i64: 2, 32>}, {transform_indices = @transform_1, window_bounds = array<i64: 16, 32>}, {pipeline_mode = #tpu.pipeline_mode<synchronous>, transform_indices = @transform_2, window_bounds = array<i64: 32, 32>}, {pipeline_mode = #tpu.pipeline_mode<synchronous>, transform_indices = @transform_3, window_bounds = array<i64: 32, 64>}, {pipeline_mode = #tpu.pipeline_mode<synchronous>, transform_indices = @transform_4, window_bounds = array<i64: 32, 32>}, {pipeline_mode = #tpu.pipeline_mode<synchronous>, transform_indices = @transform_5, window_bounds = array<i64: 1, 32>}, {pipeline_mode = #tpu.pipeline_mode<synchronous>, transform_indices = @transform_6, window_bounds = array<i64: 32, 8>}, {pipeline_mode = #tpu.pipeline_mode<synchronous>, transform_indices = @transform_7, window_bounds = array<i64: 8, 32>}, {transform_indices = @transform_8, window_bounds = array<i64: 2, 32>}, {transform_indices = @transform_9, window_bounds = array<i64: 2, 8>}]} {
    %c0 = arith.constant 0 : index
    %c0_0 = arith.constant 0 : index
    %0 = vector.load %arg1[%c0, %c0_0] : memref<2x32xf32, #tpu.memory_space<vmem>>, vector<2x32xf32>
    %c0_1 = arith.constant 0 : index
    %c0_2 = arith.constant 0 : index
    %1 = vector.load %arg3[%c0_1, %c0_2] : memref<32x32xf32, #tpu.memory_space<vmem>>, vector<32x32xf32>
    %cst = arith.constant dense<0.000000e+00> : vector<2x32xf32>
    %2 = tpu.matmul %0, %1, %cst {dimension_numbers = #tpu.dot_dimension_numbers<[1], [0], [0], [1], [0, 0, 1, 1], [], []>} : vector<2x32xf32>, vector<32x32xf32>, vector<2x32xf32> -> vector<2x32xf32>
    %cst_3 = arith.constant 5.000000e-01 : f32
    %3 = vector.broadcast %cst_3 : f32 to vector<2x32xf32>
    %4 = arith.mulf %2, %3 : vector<2x32xf32>
    %c0_4 = arith.constant 0 : index
    %c0_5 = arith.constant 0 : index
    %5 = vector.load %arg2[%c0_4, %c0_5] : memref<16x32xf32, #tpu.memory_space<vmem>>, vector<16x32xf32>
    %c0_6 = arith.constant 0 : index
    %c0_7 = arith.constant 0 : index
    %6 = vector.load %arg4[%c0_6, %c0_7] : memref<32x64xf32, #tpu.memory_space<vmem>>, vector<32x64xf32>
    %cst_8 = arith.constant dense<0.000000e+00> : vector<16x64xf32>
    %7 = tpu.matmul %5, %6, %cst_8 {dimension_numbers = #tpu.dot_dimension_numbers<[1], [0], [0], [1], [0, 0, 1, 1], [], []>} : vector<16x32xf32>, vector<32x64xf32>, vector<16x64xf32> -> vector<16x64xf32>
    %8 = vector.extract_strided_slice %7 {offsets = [0, 0], sizes = [16, 32], strides = [1, 1]} : vector<16x64xf32> to vector<16x32xf32>
    %9 = vector.extract_strided_slice %7 {offsets = [0, 32], sizes = [16, 32], strides = [1, 1]} : vector<16x64xf32> to vector<16x32xf32>
    %10 = vector.shape_cast %8 : vector<16x32xf32> to vector<2x8x32xf32>
    %11 = vector.shape_cast %4 : vector<2x32xf32> to vector<2x1x32xf32>
    %12 = vector.broadcast %11 : vector<2x1x32xf32> to vector<2x8x32xf32>
    %13 = arith.mulf %10, %12 : vector<2x8x32xf32>
    %14 = vector.shape_cast %13 : vector<2x8x32xf32> to vector<16x32xf32>
    %c0_9 = arith.constant 0 : index
    %c0_10 = arith.constant 0 : index
    %15 = vector.load %arg7[%c0_9, %c0_10] : memref<32x8xf32, #tpu.memory_space<vmem>>, vector<32x8xf32>
    %cst_11 = arith.constant dense<0.000000e+00> : vector<16x8xf32>
    %16 = tpu.matmul %14, %15, %cst_11 {dimension_numbers = #tpu.dot_dimension_numbers<[1], [0], [0], [1], [0, 0, 1, 1], [], []>} : vector<16x32xf32>, vector<32x8xf32>, vector<16x8xf32> -> vector<16x8xf32>
    %17 = vector.shape_cast %16 : vector<16x8xf32> to vector<2x8x8xf32>
    %cst_12 = arith.constant dense<0xFF800000> : vector<2x8xf32>
    %18 = vector.multi_reduction <maximumf>, %17, %cst_12 [1] : vector<2x8x8xf32> to vector<2x8xf32>
    %19 = vector.shape_cast %18 : vector<2x8xf32> to vector<2x1x8xf32>
    %20 = vector.broadcast %19 : vector<2x1x8xf32> to vector<2x8x8xf32>
    %21 = arith.subf %17, %20 : vector<2x8x8xf32>
    %22 = math.exp %21 : vector<2x8x8xf32>
    %cst_13 = arith.constant dense<0.000000e+00> : vector<2x8xf32>
    %23 = vector.multi_reduction <add>, %22, %cst_13 [1] : vector<2x8x8xf32> to vector<2x8xf32>
    %24 = vector.shape_cast %23 : vector<2x8xf32> to vector<2x1x8xf32>
    %25 = tpu.reciprocal %24 {approx = true} : vector<2x1x8xf32> -> vector<2x1x8xf32>
    %26 = vector.broadcast %25 : vector<2x1x8xf32> to vector<2x8x8xf32>
    %27 = arith.mulf %22, %26 : vector<2x8x8xf32>
    %28 = vector.shape_cast %27 : vector<2x8x8xf32> to vector<16x8xf32>
    %c0_14 = arith.constant 0 : index
    %c0_15 = arith.constant 0 : index
    %29 = vector.load %arg8[%c0_14, %c0_15] : memref<8x32xf32, #tpu.memory_space<vmem>>, vector<8x32xf32>
    %cst_16 = arith.constant dense<0.000000e+00> : vector<16x32xf32>
    %30 = tpu.matmul %28, %29, %cst_16 {dimension_numbers = #tpu.dot_dimension_numbers<[1], [0], [0], [1], [0, 0, 1, 1], [], []>} : vector<16x8xf32>, vector<8x32xf32>, vector<16x32xf32> -> vector<16x32xf32>
    %31 = arith.mulf %30, %9 : vector<16x32xf32>
    %32 = vector.shape_cast %31 : vector<16x32xf32> to vector<2x8x32xf32>
    %cst_17 = arith.constant dense<0.000000e+00> : vector<2x32xf32>
    %33 = vector.multi_reduction <add>, %32, %cst_17 [1] : vector<2x8x32xf32> to vector<2x32xf32>
    %c0_18 = arith.constant 0 : index
    %c0_19 = arith.constant 0 : index
    %34 = vector.load %arg5[%c0_18, %c0_19] : memref<32x32xf32, #tpu.memory_space<vmem>>, vector<32x32xf32>
    %cst_20 = arith.constant dense<0.000000e+00> : vector<2x32xf32>
    %35 = tpu.matmul %33, %34, %cst_20 {dimension_numbers = #tpu.dot_dimension_numbers<[1], [0], [0], [1], [0, 0, 1, 1], [], []>} : vector<2x32xf32>, vector<32x32xf32>, vector<2x32xf32> -> vector<2x32xf32>
    %c0_21 = arith.constant 0 : index
    %c0_22 = arith.constant 0 : index
    %36 = vector.load %arg6[%c0_21, %c0_22] : memref<1x32xf32, #tpu.memory_space<vmem>>, vector<1x32xf32>
    %37 = vector.broadcast %36 : vector<1x32xf32> to vector<2x32xf32>
    %38 = arith.addf %35, %37 : vector<2x32xf32>
    %c0_23 = arith.constant 0 : index
    %c0_24 = arith.constant 0 : index
    %39 = vector.load %arg9[%c0_23, %c0_24] : memref<2x32xf32, #tpu.memory_space<vmem>>, vector<2x32xf32>
    tpu.vector_store %arg9[%c0_23, %c0_24], %38 {strides = array<i32>} : memref<2x32xf32, #tpu.memory_space<vmem>>, vector<2x32xf32>,
    %cst_25 = arith.constant dense<0.000000e+00> : vector<2x8xf32>
    %40 = vector.multi_reduction <add>, %27, %cst_25 [2] : vector<2x8x8xf32> to vector<2x8xf32>
    %cst_26 = arith.constant 8.000000e+00 : f32
    %41 = vector.broadcast %cst_26 : f32 to vector<2x8xf32>
    %42 = arith.divf %40, %41 : vector<2x8xf32>
    %c0_27 = arith.constant 0 : index
    %c0_28 = arith.constant 0 : index
    %43 = vector.load %arg10[%c0_27, %c0_28] : memref<2x8xf32, #tpu.memory_space<vmem>>, vector<2x8xf32>
    tpu.vector_store %arg10[%c0_27, %c0_28], %42 {strides = array<i32>} : memref<2x8xf32, #tpu.memory_space<vmem>>, vector<2x8xf32>,
    return
  }
  func.func @transform_0(%arg0: i32) -> (i32, i32) {
    %c0_i32 = arith.constant 0 : i32
    %c0_i32_0 = arith.constant 0 : i32
    return %arg0, %c0_i32 : i32, i32
  }
  func.func @transform_1(%arg0: i32) -> (i32, i32) {
    %c0_i32 = arith.constant 0 : i32
    %c0_i32_0 = arith.constant 0 : i32
    return %arg0, %c0_i32 : i32, i32
  }
  func.func @transform_2(%arg0: i32) -> (i32, i32) {
    %c0_i32 = arith.constant 0 : i32
    %c0_i32_0 = arith.constant 0 : i32
    %c0_i32_1 = arith.constant 0 : i32
    return %c0_i32, %c0_i32_0 : i32, i32
  }
  func.func @transform_3(%arg0: i32) -> (i32, i32) {
    %c0_i32 = arith.constant 0 : i32
    %c0_i32_0 = arith.constant 0 : i32
    %c0_i32_1 = arith.constant 0 : i32
    return %c0_i32, %c0_i32_0 : i32, i32
  }
  func.func @transform_4(%arg0: i32) -> (i32, i32) {
    %c0_i32 = arith.constant 0 : i32
    %c0_i32_0 = arith.constant 0 : i32
    %c0_i32_1 = arith.constant 0 : i32
    return %c0_i32, %c0_i32_0 : i32, i32
  }
  func.func @transform_5(%arg0: i32) -> (i32, i32) {
    %c0_i32 = arith.constant 0 : i32
    %c0_i32_0 = arith.constant 0 : i32
    %c0_i32_1 = arith.constant 0 : i32
    return %c0_i32, %c0_i32_0 : i32, i32
  }
  func.func @transform_6(%arg0: i32) -> (i32, i32) {
    %c0_i32 = arith.constant 0 : i32
    %c0_i32_0 = arith.constant 0 : i32
    %c0_i32_1 = arith.constant 0 : i32
    return %c0_i32, %c0_i32_0 : i32, i32
  }
  func.func @transform_7(%arg0: i32) -> (i32, i32) {
    %c0_i32 = arith.constant 0 : i32
    %c0_i32_0 = arith.constant 0 : i32
    %c0_i32_1 = arith.constant 0 : i32
    return %c0_i32, %c0_i32_0 : i32, i32
  }
  func.func @transform_8(%arg0: i32) -> (i32, i32) {
    %c0_i32 = arith.constant 0 : i32
    %c0_i32_0 = arith.constant 0 : i32
    return %arg0, %c0_i32 : i32, i32
  }
  func.func @transform_9(%arg0: i32) -> (i32, i32) {
    %c0_i32 = arith.constant 0 : i32
    %c0_i32_0 = arith.constant 0 : i32
    return %arg0, %c0_i32 : i32, i32
  }
}

</mosaic_0001>

<llo_original>
// kernel: tpu_custom_call.1
$region0: #{tpu_custom_call.1}
  #allocation0 [shape = 'u32[]', space=smem, size = 0x4, offset = 0x4, fixed_abs, tag = 'smem constant byte address 0x4 - core index']
  #allocation1 [shape = 'u32[72,128]{1,0:T(1,128)}', space=vmem, size = 0x9000, scoped, tag = 'internal scratch']
  %s0 = inlined_call_operand.hbm [shape: f32[2,32], index: 0, kind: input, shape index: {}]
  %s1 = inlined_call_operand.hbm [shape: f32[16,32], index: 1, kind: input, shape index: {}]
  %s2 = inlined_call_operand.vmem [shape: f32[32,32], index: 2, kind: input, shape index: {}]
  %s3 = inlined_call_operand.hbm [shape: f32[32,64], index: 3, kind: input, shape index: {}]
  %s4 = inlined_call_operand.hbm [shape: f32[32,32], index: 4, kind: input, shape index: {}]
  %s5 = inlined_call_operand.vmem [shape: f32[1,32], index: 5, kind: input, shape index: {}]
  %s6 = inlined_call_operand.vmem [shape: f32[32,8], index: 6, kind: input, shape index: {}]
  %s7 = inlined_call_operand.vmem [shape: f32[8,32], index: 7, kind: input, shape index: {}]
  %s8 = inlined_call_operand.hbm [shape: f32[2,32], index: 8, kind: output, shape index: {0}]
  %s9 = inlined_call_operand.hbm [shape: f32[2,8], index: 9, kind: output, shape index: {1}]
  %10 = xla_tuple %s8, %s9
  %s11 = sld [smem:[#allocation0]]
  $region66: #{tpu_custom_call.1} parent=0
    _
  %s13 = ssub.s32 1, %s11
  %s14 = scalar_select 0, %s13, %s11
  $region1: #{tpu_custom_call.1} parent=0
    #allocation2 [shape = 'u8[1024]{0}', space=vmem, size = 0x400, scoped, tag = 'input window, operand 0, single buffered']
    #allocation3 [shape = 's32[1]{0}', space=sflag, size = 0x4, scoped, tag = 'scoped memory for tpu_custom_call.1']
    #allocation4 [shape = 's32[1]{0}', space=sflag, size = 0x4, scoped, tag = 'scoped memory for tpu_custom_call.1']
    #allocation5 [shape = 'u8[8192]{0}', space=vmem, size = 0x2000, scoped, tag = 'input window, operand 1, single buffered']
    #allocation6 [shape = 's32[1]{0}', space=sflag, size = 0x4, scoped, tag = 'scoped memory for tpu_custom_call.1']
    #allocation7 [shape = 'u8[16384]{0}', space=vmem, size = 0x4000, scoped, tag = 'input window, operand 3, single buffered']
    #allocation8 [shape = 'u8[16384]{0}', space=vmem, size = 0x4000, scoped, tag = 'input window, operand 4, single buffered']
    #allocation9 [shape = 's32[1]{0}', space=sflag, size = 0x4, scoped, tag = 'scoped memory for tpu_custom_call.1']
    #allocation10 [shape = 'u8[1024]{0}', space=vmem, size = 0x400, scoped, tag = 'output window, operand 0, single buffered']
    #allocation11 [shape = 'u8[1024]{0}', space=vmem, size = 0x400, scoped, tag = 'output window, operand 1, single buffered']
    #allocation12 [shape = 's32[1]{0}', space=sflag, size = 0x4, scoped, tag = 'scoped memory for tpu_custom_call.1']
    %15 = vsyncpa [#allocation3], 0
    %16 = vsyncpa [#allocation6], 0
    %17 = vsyncpa [#allocation9], 0
    %18 = vsyncpa [#allocation4], 0
    %19 = vsyncpa [#allocation12], 0
    // Predicated region
    $region2: #{tpu_custom_call.1} parent=1 // pred_check
      _
    $region3: #{tpu_custom_call.1} parent=1 // pred_check_branch
      %21 = sbr.rel (0) target = $region5
    $region4: #{tpu_custom_call.1} parent=1 // pred_region
      %23 = vsyncadd [#allocation3], 0
      %s25 = sshll.u32 %s0, 4
      %s26 = int_to_ptr.hbm [resolvable:$true] %s25
      %s27 = sshll.u32 [#allocation2], 4
      %s28 = int_to_ptr.vmem [resolvable:$true] %s27
      %30 = dma.hbm_to_vmem [thread:$0]  %s26, 32, %s28, [#allocation3]
    $region5: #{tpu_custom_call.1} parent=1 // pred_fallthru
      _
    // Predicated region
    $region6: #{tpu_custom_call.1} parent=1 // pred_check
      _
    $region7: #{tpu_custom_call.1} parent=1 // pred_check_branch
      %32 = sbr.rel (0) target = $region9
    $region8: #{tpu_custom_call.1} parent=1 // pred_region
      %34 = vsyncadd [#allocation6], 0
      %s35 = sshll.u32 %s1, 4
      %s36 = int_to_ptr.hbm [resolvable:$true] %s35
      %s37 = sshll.u32 [#allocation5], 4
      %s38 = int_to_ptr.vmem [resolvable:$true] %s37
      %43 = dma.hbm_to_vmem [thread:$0]  %s36, 256, %s38, [#allocation6], 128, 128, 8
    $region9: #{tpu_custom_call.1} parent=1 // pred_fallthru
      _
    // Predicated region
    $region10: #{tpu_custom_call.1} parent=1 // pred_check
      _
    $region11: #{tpu_custom_call.1} parent=1 // pred_check_branch
      %45 = sbr.rel (0) target = $region13
    $region12: #{tpu_custom_call.1} parent=1 // pred_region
      _
    $region13: #{tpu_custom_call.1} parent=1 // pred_fallthru
      _
    // Predicated region
    $region14: #{tpu_custom_call.1} parent=1 // pred_check
      _
    $region15: #{tpu_custom_call.1} parent=1 // pred_check_branch
      %47 = sbr.rel (0) target = $region17
    $region16: #{tpu_custom_call.1} parent=1 // pred_region
      %49 = vsyncadd [#allocation6], 0
      %s50 = sshll.u32 %s3, 4
      %s51 = int_to_ptr.hbm [resolvable:$true] %s50
      %s52 = sshll.u32 [#allocation7], 4
      %s53 = int_to_ptr.vmem [resolvable:$true] %s52
      %58 = dma.hbm_to_vmem [thread:$0]  %s51, 512, %s53, [#allocation6], 128, 128, 8
    $region17: #{tpu_custom_call.1} parent=1 // pred_fallthru
      _
    // Predicated region
    $region18: #{tpu_custom_call.1} parent=1 // pred_check
      _
    $region19: #{tpu_custom_call.1} parent=1 // pred_check_branch
      %60 = sbr.rel (0) target = $region21
    $region20: #{tpu_custom_call.1} parent=1 // pred_region
      %62 = vsyncadd [#allocation9], 0
      %s63 = sshll.u32 %s4, 4
      %s64 = int_to_ptr.hbm [resolvable:$true] %s63
      %s65 = sshll.u32 [#allocation8], 4
      %s66 = int_to_ptr.vmem [resolvable:$true] %s65
      %71 = dma.hbm_to_vmem [thread:$0]  %s64, 512, %s66, [#allocation9], 128, 128, 8
    $region21: #{tpu_custom_call.1} parent=1 // pred_fallthru
      _
    // Predicated region
    $region22: #{tpu_custom_call.1} parent=1 // pred_check
      _
    $region23: #{tpu_custom_call.1} parent=1 // pred_check_branch
      %73 = sbr.rel (0) target = $region25
    $region24: #{tpu_custom_call.1} parent=1 // pred_region
      _
    $region25: #{tpu_custom_call.1} parent=1 // pred_fallthru
      _
    // Predicated region
    $region26: #{tpu_custom_call.1} parent=1 // pred_check
      _
    $region27: #{tpu_custom_call.1} parent=1 // pred_check_branch
      %75 = sbr.rel (0) target = $region29
    $region28: #{tpu_custom_call.1} parent=1 // pred_region
      _
    $region29: #{tpu_custom_call.1} parent=1 // pred_fallthru
      _
    // Predicated region
    $region30: #{tpu_custom_call.1} parent=1 // pred_check
      _
    $region31: #{tpu_custom_call.1} parent=1 // pred_check_branch
      %77 = sbr.rel (0) target = $region33
    $region32: #{tpu_custom_call.1} parent=1 // pred_region
      _
    $region33: #{tpu_custom_call.1} parent=1 // pred_fallthru
      _
    // Predicated region
    $region34: #{tpu_custom_call.1} parent=1 // pred_check
      _
    $region35: #{tpu_custom_call.1} parent=1 // pred_check_branch
      %79 = sbr.rel (0) target = $region37
    $region36: #{tpu_custom_call.1} parent=1 // pred_region
      %81 = dma.done [#allocation3], 32
    $region37: #{tpu_custom_call.1} parent=1 // pred_fallthru
      _
    // Predicated region
    $region38: #{tpu_custom_call.1} parent=1 // pred_check
      _
    $region39: #{tpu_custom_call.1} parent=1 // pred_check_branch
      %83 = sbr.rel (0) target = $region41
    $region40: #{tpu_custom_call.1} parent=1 // pred_region
      %85 = dma.done [#allocation6], 256
    $region41: #{tpu_custom_call.1} parent=1 // pred_fallthru
      _
    // Predicated region
    $region42: #{tpu_custom_call.1} parent=1 // pred_check
      _
    $region43: #{tpu_custom_call.1} parent=1 // pred_check_branch
      %87 = sbr.rel (0) target = $region45
    $region44: #{tpu_custom_call.1} parent=1 // pred_region
      %89 = dma.done [#allocation6], 512
    $region45: #{tpu_custom_call.1} parent=1 // pred_fallthru
      _
    // Predicated region
    $region46: #{tpu_custom_call.1} parent=1 // pred_check
      _
    $region47: #{tpu_custom_call.1} parent=1 // pred_check_branch
      %91 = sbr.rel (0) target = $region49
    $region48: #{tpu_custom_call.1} parent=1 // pred_region
      %93 = dma.done [#allocation9], 512
    $region49: #{tpu_custom_call.1} parent=1 // pred_fallthru
      _
    %v94 = vld [vmem:[#allocation2] sm:$0x3]
    %v95 = vld [vmem:[%s2] sm:$0xff]
    %v96 = vld [vmem:[%s2 + $0x8] sm:$0xff]
    %v97 = vld [vmem:[%s2 + $0x10] sm:$0xff]
    %v98 = vld [vmem:[%s2 + $0x18] sm:$0xff]
    %vm99 = vcmask 261120
    %v101 = vsel %vm99, %v94, 0
    %103 = vmatpush.msra.mxu0 0.0
    %104 = vmatpush.msra.mxu0 0.0
    %105 = vmatpush.msra.mxu0 0.0
    %106 = vmatpush.msra.mxu0 0.0
    %107 = vmatpush.msra.mxu0 0.0
    %108 = vmatpush.msra.mxu0 0.0
    %109 = vmatpush.msra.mxu0 0.0
    %110 = vmatpush.msra.mxu0 0.0
    %111 = vmatpush.msra.mxu0 0.0
    %112 = vmatpush.msra.mxu0 0.0
    %113 = vmatpush.msra.mxu0 0.0
    %114 = vmatpush.msra.mxu0 0.0
    %115 = vmatpush.msra.mxu0 %v98
    %116 = vmatpush.msra.mxu0 %v97
    %117 = vmatpush.msra.mxu0 %v96
    %118 = vmatpush.msra.mxu0 %v95
    %119 = vmatmul.f32.gmra.mxu0 %v101
    %v120 = vpop.f32.mrf.mxu0
    %v121 = vadd.f32 0.0, %v120
    %122 = vdwg.mxu0
    %v123 = vmul.f32 %v121, 0.5
    %v124 = vld [vmem:[#allocation5] sm:$0xff]
    %v125 = vld [vmem:[#allocation5 + $0x8] sm:$0xff]
    %v126 = vld [vmem:[#allocation7] sm:$0xff]
    %v127 = vld [vmem:[#allocation7 + $0x8] sm:$0xff]
    %v128 = vld [vmem:[#allocation7 + $0x10] sm:$0xff]
    %v129 = vld [vmem:[#allocation7 + $0x18] sm:$0xff]
    %v131 = vsel %vm99, %v124, 0
    %v134 = vsel %vm99, %v125, 0
    %136 = vmatpush.msra.mxu0 0.0
    %137 = vmatpush.msra.mxu0 0.0
    %138 = vmatpush.msra.mxu0 0.0
    %139 = vmatpush.msra.mxu0 0.0
    %140 = vmatpush.msra.mxu0 0.0
    %141 = vmatpush.msra.mxu0 0.0
    %142 = vmatpush.msra.mxu0 0.0
    %143 = vmatpush.msra.mxu0 0.0
    %144 = vmatpush.msra.mxu0 0.0
    %145 = vmatpush.msra.mxu0 0.0
    %146 = vmatpush.msra.mxu0 0.0
    %147 = vmatpush.msra.mxu0 0.0
    %148 = vmatpush.msra.mxu0 %v129
    %149 = vmatpush.msra.mxu0 %v128
    %150 = vmatpush.msra.mxu0 %v127
    %151 = vmatpush.msra.mxu0 %v126
    %152 = vmatmul.f32.gmra.mxu0 %v131
    %v153 = vpop.f32.mrf.mxu0
    %v154 = vadd.f32 0.0, %v153
    %155 = vmatmul.f32.gmra.mxu0 %v134
    %v156 = vpop.f32.mrf.mxu0
    %v157 = vadd.f32 0.0, %v156
    %158 = vdwg.mxu0
    %v160 = vrot.slane %v123, 1
    %v161 = vperm.slane %v123, 0
    %v162 = vperm.slane %v160, 0
    %v165 = vmul.f32 %v154, %v161
    %v166 = vmul.f32 %v157, %v162
    %v167 = vld [vmem:[%s6] sm:$0xff]
    %v168 = vld [vmem:[%s6 + $0x8] sm:$0xff]
    %v169 = vld [vmem:[%s6 + $0x10] sm:$0xff]
    %v170 = vld [vmem:[%s6 + $0x18] sm:$0xff]
    %v172 = vsel %vm99, %v165, 0
    %v175 = vsel %vm99, %v166, 0
    %177 = vmatpush.msra.mxu0 0.0
    %178 = vmatpush.msra.mxu0 0.0
    %179 = vmatpush.msra.mxu0 0.0
    %180 = vmatpush.msra.mxu0 0.0
    %181 = vmatpush.msra.mxu0 0.0
    %182 = vmatpush.msra.mxu0 0.0
    %183 = vmatpush.msra.mxu0 0.0
    %184 = vmatpush.msra.mxu0 0.0
    %185 = vmatpush.msra.mxu0 0.0
    %186 = vmatpush.msra.mxu0 0.0
    %187 = vmatpush.msra.mxu0 0.0
    %188 = vmatpush.msra.mxu0 0.0
    %189 = vmatpush.msra.mxu0 %v170
    %190 = vmatpush.msra.mxu0 %v169
    %191 = vmatpush.msra.mxu0 %v168
    %192 = vmatpush.msra.mxu0 %v167
    %193 = vmatmul.f32.gmra.mxu0 %v172
    %v194 = vpop.f32.mrf.mxu0
    %v195 = vadd.f32 0.0, %v194
    %196 = vmatmul.f32.gmra.mxu0 %v175
    %v197 = vpop.f32.mrf.mxu0
    %v198 = vadd.f32 0.0, %v197
    %199 = vdwg.mxu0
    %vm200 = vcmask 64512
    %v201 = vsel %vm200, %v195, -inf
    %v202 = vrot.slane %v201, 4
    %v203 = vmax.f32 %v201, %v202
    %v204 = vrot.slane %v203, 2
    %v205 = vmax.f32 %v203, %v204
    %v206 = vrot.slane %v205, 1
    %v207 = vmax.f32 %v205, %v206
    %v208 = vsel %vm200, %v198, -inf
    %v209 = vrot.slane %v208, 4
    %v210 = vmax.f32 %v208, %v209
    %v211 = vrot.slane %v210, 2
    %v212 = vmax.f32 %v210, %v211
    %v213 = vrot.slane %v212, 1
    %v214 = vmax.f32 %v212, %v213
    %v215 = vsub.f32 %v195, %v207
    %v216 = vsub.f32 %v198, %v214
    %v217 = vmul.f32 %v215, 1.442695
    %v218 = vpow.pop %v217
    %v219 = vmul.f32 %v216, 1.442695
    %v220 = vpow.pop %v219
    %v221 = vsel %vm200, %v218, 0.0
    %v222 = vrot.slane %v221, 4
    %v223 = vadd.f32 %v221, %v222
    %v224 = vrot.slane %v223, 2
    %v225 = vadd.f32 %v223, %v224
    %v226 = vrot.slane %v225, 1
    %v227 = vadd.f32 %v225, %v226
    %v228 = vsel %vm200, %v220, 0.0
    %v229 = vrot.slane %v228, 4
    %v230 = vadd.f32 %v228, %v229
    %v231 = vrot.slane %v230, 2
    %v232 = vadd.f32 %v230, %v231
    %v233 = vrot.slane %v232, 1
    %v234 = vadd.f32 %v232, %v233
    %v235 = vrcp.pop %v227
    %v236 = vrcp.pop %v234
    %v237 = vmul.f32 %v218, %v235
    %v238 = vmul.f32 %v220, %v236
    %v239 = vld [vmem:[%s7] sm:$0xff]
    %v241 = vsel %vm200, %v237, 0
    %v244 = vsel %vm200, %v238, 0
    %246 = vmatpush.msra.mxu0 0.0
    %247 = vmatpush.msra.mxu0 0.0
    %248 = vmatpush.msra.mxu0 0.0
    %249 = vmatpush.msra.mxu0 0.0
    %250 = vmatpush.msra.mxu0 0.0
    %251 = vmatpush.msra.mxu0 0.0
    %252 = vmatpush.msra.mxu0 0.0
    %253 = vmatpush.msra.mxu0 0.0
    %254 = vmatpush.msra.mxu0 0.0
    %255 = vmatpush.msra.mxu0 0.0
    %256 = vmatpush.msra.mxu0 0.0
    %257 = vmatpush.msra.mxu0 0.0
    %258 = vmatpush.msra.mxu0 0.0
    %259 = vmatpush.msra.mxu0 0.0
    %260 = vmatpush.msra.mxu0 0.0
    %261 = vmatpush.msra.mxu0 %v239
    %262 = vmatmul.f32.gmra.mxu0 %v241
    %v263 = vpop.f32.mrf.mxu0
    %v264 = vadd.f32 0.0, %v263
    %265 = vmatmul.f32.gmra.mxu0 %v244
    %v266 = vpop.f32.mrf.mxu0
    %v267 = vadd.f32 0.0, %v266
    %268 = vdwg.mxu0
    %271 = vrot.lane.b32.xlu0 %v154, 96
    %v272 = vpop.permute.xlu0 %271
    %273 = vrot.lane.b32.xlu0 %v157, 96
    %v274 = vpop.permute.xlu0 %273
    %v277 = vmul.f32 %v264, %v272
    %v278 = vmul.f32 %v267, %v274
    %v279 = vsel %vm99, %v277, 0.0
    %v280 = vrot.slane %v279, 4
    %v281 = vadd.f32 %v279, %v280
    %v282 = vrot.slane %v281, 2
    %v283 = vadd.f32 %v281, %v282
    %v284 = vrot.slane %v283, 1
    %v285 = vadd.f32 %v283, %v284
    %v286 = vsel %vm99, %v278, 0.0
    %v287 = vrot.slane %v286, 4
    %v288 = vadd.f32 %v286, %v287
    %v289 = vrot.slane %v288, 2
    %v290 = vadd.f32 %v288, %v289
    %v291 = vrot.slane %v290, 1
    %v292 = vadd.f32 %v290, %v291
    %v293 = vld [vmem:[#allocation8] sm:$0xff]
    %v294 = vld [vmem:[#allocation8 + $0x8] sm:$0xff]
    %v295 = vld [vmem:[#allocation8 + $0x10] sm:$0xff]
    %v296 = vld [vmem:[#allocation8 + $0x18] sm:$0xff]
    %v297 = vld [vmem:[%s5] sm:$0x1]
    %v299 = vperm.slane %v297, 0
    %vm303 = vcmask 1041409
    %v304 = vsel %vm303, %v292, %v285
    %v305 = vsel %vm99, %v304, 0
    %307 = vmatpush.msra.mxu0 0.0
    %308 = vmatpush.msra.mxu0 0.0
    %309 = vmatpush.msra.mxu0 0.0
    %310 = vmatpush.msra.mxu0 0.0
    %311 = vmatpush.msra.mxu0 0.0
    %312 = vmatpush.msra.mxu0 0.0
    %313 = vmatpush.msra.mxu0 0.0
    %314 = vmatpush.msra.mxu0 0.0
    %315 = vmatpush.msra.mxu0 0.0
    %316 = vmatpush.msra.mxu0 0.0
    %317 = vmatpush.msra.mxu0 0.0
    %318 = vmatpush.msra.mxu0 0.0
    %319 = vmatpush.msra.mxu0 %v296
    %320 = vmatpush.msra.mxu0 %v295
    %321 = vmatpush.msra.mxu0 %v294
    %322 = vmatpush.msra.mxu0 %v293
    %323 = vmatmul.f32.gmra.mxu0 %v305
    %v324 = vpop.f32.mrf.mxu0
    %v325 = vadd.f32 %v299, %v324
    %326 = vdwg.mxu0
    %vm327 = vcmask 254976
    %328 = vst.msk [vmem:[#allocation10] sm:$0x3] %vm327, %v325
    %v329 = vsel %vm200, %v237, 0.0
    %330 = vadd.xlane.f32.xlu0 %v329
    %v331 = vpop.xlane.xlu0 %330
    %v332 = vsel %vm200, %v238, 0.0
    %333 = vadd.xlane.f32.xlu0 %v332
    %v334 = vpop.xlane.xlu0 %333
    %v335 = vrcp.pop 8.0
    %v336 = vmul.f32 8.0, %v335
    %v337 = vsub.f32 1.0, %v336
    %v338 = vmul.f32 %v335, %v337
    %v339 = vadd.f32 %v335, %v338
    %vm340 = vweird.f32 %v335
    %v341 = vsel %vm340, %v335, %v339
    %v342 = vmul.f32 %v331, %v341
    %v343 = vmul.f32 %v334, %v341
    %v346 = vlaneseq
    %v347 = vand.u32 %v346, 127
    %v348 = vperm.slane %v342, %v347
    %v349 = vperm.slane %v343, %v347
    %v350 = vsel %vm303, %v349, %v348
    %vm352 = vcmask 58368
    %353 = vst.msk [vmem:[#allocation11] sm:$0x3] %vm352, %v350
    // Predicated region
    $region50: #{tpu_custom_call.1} parent=1 // pred_check
      _
    $region51: #{tpu_custom_call.1} parent=1 // pred_check_branch
      %355 = sbr.rel (0) target = $region53
    $region52: #{tpu_custom_call.1} parent=1 // pred_region
      %357 = vsyncadd [#allocation4], 0
      %s359 = sshll.u32 [#allocation10], 4
      %s360 = int_to_ptr.vmem [resolvable:$true] %s359
      %s361 = sshll.u32 %s8, 4
      %s362 = int_to_ptr.hbm [resolvable:$true] %s361
      %364 = dma.vmem_to_hbm [thread:$0]  %s360, 32, %s362, [#allocation4]
    $region53: #{tpu_custom_call.1} parent=1 // pred_fallthru
      _
    // Predicated region
    $region54: #{tpu_custom_call.1} parent=1 // pred_check
      _
    $region55: #{tpu_custom_call.1} parent=1 // pred_check_branch
      %366 = sbr.rel (0) target = $region57
    $region56: #{tpu_custom_call.1} parent=1 // pred_region
      %368 = vsyncadd [#allocation12], 0
      %s370 = sshll.u32 [#allocation11], 4
      %s371 = int_to_ptr.vmem [resolvable:$true] %s370
      %s372 = sshll.u32 %s9, 4
      %s373 = int_to_ptr.hbm [resolvable:$true] %s372
      %375 = dma.vmem_to_hbm [thread:$0]  %s371, 32, %s373, [#allocation12]
    $region57: #{tpu_custom_call.1} parent=1 // pred_fallthru
      _
    // Predicated region
    $region58: #{tpu_custom_call.1} parent=1 // pred_check
      _
    $region59: #{tpu_custom_call.1} parent=1 // pred_check_branch
      %377 = sbr.rel (0) target = $region61
    $region60: #{tpu_custom_call.1} parent=1 // pred_region
      %379 = dma.done [#allocation4], 32
    $region61: #{tpu_custom_call.1} parent=1 // pred_fallthru
      _
    // Predicated region
    $region62: #{tpu_custom_call.1} parent=1 // pred_check
      _
    $region63: #{tpu_custom_call.1} parent=1 // pred_check_branch
      %381 = sbr.rel (0) target = $region65
    $region64: #{tpu_custom_call.1} parent=1 // pred_region
      %383 = dma.done [#allocation12], 32
    $region65: #{tpu_custom_call.1} parent=1 // pred_fallthru
      _
    %384 = vsyncpa [#allocation3], 1
    %385 = vsyncpa [#allocation6], 1
    %386 = vsyncpa [#allocation9], 1
    %387 = vsyncpa [#allocation4], 1
    %388 = vsyncpa [#allocation12], 1

// kernel: tpu_custom_call.1
$region0: #{tpu_custom_call.1}
  #allocation0 [shape = 'u32[]', space=smem, size = 0x4, offset = 0x4, fixed_abs, tag = 'smem constant byte address 0x4 - core index']
  #allocation1 [shape = 'u32[72,128]{1,0:T(1,128)}', space=vmem, size = 0x9000, scoped, tag = 'internal scratch']
  %s0 = inlined_call_operand.hbm [shape: f32[2,32], index: 0, kind: input, shape index: {}]
  %s1 = inlined_call_operand.hbm [shape: f32[16,32], index: 1, kind: input, shape index: {}]
  %s2 = inlined_call_operand.vmem [shape: f32[32,32], index: 2, kind: input, shape index: {}]
  %s3 = inlined_call_operand.hbm [shape: f32[32,64], index: 3, kind: input, shape index: {}]
  %s4 = inlined_call_operand.hbm [shape: f32[32,32], index: 4, kind: input, shape index: {}]
  %s5 = inlined_call_operand.vmem [shape: f32[1,32], index: 5, kind: input, shape index: {}]
  %s6 = inlined_call_operand.vmem [shape: f32[32,8], index: 6, kind: input, shape index: {}]
  %s7 = inlined_call_operand.vmem [shape: f32[8,32], index: 7, kind: input, shape index: {}]
  %s8 = inlined_call_operand.hbm [shape: f32[2,32], index: 8, kind: output, shape index: {0}]
  %s9 = inlined_call_operand.hbm [shape: f32[2,8], index: 9, kind: output, shape index: {1}]
  %10 = xla_tuple %s8, %s9
  %s11 = sld [smem:[#allocation0]]
  $region66: #{tpu_custom_call.1} parent=0
    _
  %s13 = ssub.s32 1, %s11
  %s14 = scalar_select 0, %s13, %s11
  $region1: #{tpu_custom_call.1} parent=0
    #allocation2 [shape = 'u8[1024]{0}', space=vmem, size = 0x400, scoped, tag = 'input window, operand 0, single buffered']
    #allocation3 [shape = 's32[1]{0}', space=sflag, size = 0x4, scoped, tag = 'scoped memory for tpu_custom_call.1']
    #allocation4 [shape = 's32[1]{0}', space=sflag, size = 0x4, scoped, tag = 'scoped memory for tpu_custom_call.1']
    #allocation5 [shape = 'u8[8192]{0}', space=vmem, size = 0x2000, scoped, tag = 'input window, operand 1, single buffered']
    #allocation6 [shape = 's32[1]{0}', space=sflag, size = 0x4, scoped, tag = 'scoped memory for tpu_custom_call.1']
    #allocation7 [shape = 'u8[16384]{0}', space=vmem, size = 0x4000, scoped, tag = 'input window, operand 3, single buffered']
    #allocation8 [shape = 'u8[16384]{0}', space=vmem, size = 0x4000, scoped, tag = 'input window, operand 4, single buffered']
    #allocation9 [shape = 's32[1]{0}', space=sflag, size = 0x4, scoped, tag = 'scoped memory for tpu_custom_call.1']
    #allocation10 [shape = 'u8[1024]{0}', space=vmem, size = 0x400, scoped, tag = 'output window, operand 0, single buffered']
    #allocation11 [shape = 'u8[1024]{0}', space=vmem, size = 0x400, scoped, tag = 'output window, operand 1, single buffered']
    #allocation12 [shape = 's32[1]{0}', space=sflag, size = 0x4, scoped, tag = 'scoped memory for tpu_custom_call.1']
    %15 = vsyncpa [#allocation3], 0
    %16 = vsyncpa [#allocation6], 0
    %17 = vsyncpa [#allocation9], 0
    %18 = vsyncpa [#allocation4], 0
    %19 = vsyncpa [#allocation12], 0
    // Predicated region
    $region2: #{tpu_custom_call.1} parent=1 // pred_check
      _
    $region3: #{tpu_custom_call.1} parent=1 // pred_check_branch
      %21 = sbr.rel (0) target = $region5
    $region4: #{tpu_custom_call.1} parent=1 // pred_region
      %23 = vsyncadd [#allocation3], 0
      %s25 = sshll.u32 %s0, 4
      %s26 = int_to_ptr.hbm [resolvable:$true] %s25
      %s27 = sshll.u32 [#allocation2], 4
      %s28 = int_to_ptr.vmem [resolvable:$true] %s27
      %30 = dma.hbm_to_vmem [thread:$0]  %s26, 32, %s28, [#allocation3]
    $region5: #{tpu_custom_call.1} parent=1 // pred_fallthru
      _
    // Predicated region
    $region6: #{tpu_custom_call.1} parent=1 // pred_check
      _
    $region7: #{tpu_custom_call.1} parent=1 // pred_check_branch
      %32 = sbr.rel (0) target = $region9
    $region8: #{tpu_custom_call.1} parent=1 // pred_region
      %34 = vsyncadd [#allocation6], 0
      %s35 = sshll.u32 %s1, 4
      %s36 = int_to_ptr.hbm [resolvable:$true] %s35
      %s37 = sshll.u32 [#allocation5], 4
      %s38 = int_to_ptr.vmem [resolvable:$true] %s37
      %43 = dma.hbm_to_vmem [thread:$0]  %s36, 256, %s38, [#allocation6], 128, 128, 8
    $region9: #{tpu_custom_call.1} parent=1 // pred_fallthru
      _
    // Predicated region
    $region10: #{tpu_custom_call.1} parent=1 // pred_check
      _
    $region11: #{tpu_custom_call.1} parent=1 // pred_check_branch
      %45 = sbr.rel (0) target = $region13
    $region12: #{tpu_custom_call.1} parent=1 // pred_region
      _
    $region13: #{tpu_custom_call.1} parent=1 // pred_fallthru
      _
    // Predicated region
    $region14: #{tpu_custom_call.1} parent=1 // pred_check
      _
    $region15: #{tpu_custom_call.1} parent=1 // pred_check_branch
      %47 = sbr.rel (0) target = $region17
    $region16: #{tpu_custom_call.1} parent=1 // pred_region
      %49 = vsyncadd [#allocation6], 0
      %s50 = sshll.u32 %s3, 4
      %s51 = int_to_ptr.hbm [resolvable:$true] %s50
      %s52 = sshll.u32 [#allocation7], 4
      %s53 = int_to_ptr.vmem [resolvable:$true] %s52
      %58 = dma.hbm_to_vmem [thread:$0]  %s51, 512, %s53, [#allocation6], 128, 128, 8
    $region17: #{tpu_custom_call.1} parent=1 // pred_fallthru
      _
    // Predicated region
    $region18: #{tpu_custom_call.1} parent=1 // pred_check
      _
    $region19: #{tpu_custom_call.1} parent=1 // pred_check_branch
      %60 = sbr.rel (0) target = $region21
    $region20: #{tpu_custom_call.1} parent=1 // pred_region
      %62 = vsyncadd [#allocation9], 0
      %s63 = sshll.u32 %s4, 4
      %s64 = int_to_ptr.hbm [resolvable:$true] %s63
      %s65 = sshll.u32 [#allocation8], 4
      %s66 = int_to_ptr.vmem [resolvable:$true] %s65
      %71 = dma.hbm_to_vmem [thread:$0]  %s64, 512, %s66, [#allocation9], 128, 128, 8
    $region21: #{tpu_custom_call.1} parent=1 // pred_fallthru
      _
    // Predicated region
    $region22: #{tpu_custom_call.1} parent=1 // pred_check
      _
    $region23: #{tpu_custom_call.1} parent=1 // pred_check_branch
      %73 = sbr.rel (0) target = $region25
    $region24: #{tpu_custom_call.1} parent=1 // pred_region
      _
    $region25: #{tpu_custom_call.1} parent=1 // pred_fallthru
      _
    // Predicated region
    $region26: #{tpu_custom_call.1} parent=1 // pred_check
      _
    $region27: #{tpu_custom_call.1} parent=1 // pred_check_branch
      %75 = sbr.rel (0) target = $region29
    $region28: #{tpu_custom_call.1} parent=1 // pred_region
      _
    $region29: #{tpu_custom_call.1} parent=1 // pred_fallthru
      _
    // Predicated region
    $region30: #{tpu_custom_call.1} parent=1 // pred_check
      _
    $region31: #{tpu_custom_call.1} parent=1 // pred_check_branch
      %77 = sbr.rel (0) target = $region33
    $region32: #{tpu_custom_call.1} parent=1 // pred_region
      _
    $region33: #{tpu_custom_call.1} parent=1 // pred_fallthru
      _
    // Predicated region
    $region34: #{tpu_custom_call.1} parent=1 // pred_check
      _
    $region35: #{tpu_custom_call.1} parent=1 // pred_check_branch
      %79 = sbr.rel (0) target = $region37
    $region36: #{tpu_custom_call.1} parent=1 // pred_region
      %81 = dma.done [#allocation3], 32
    $region37: #{tpu_custom_call.1} parent=1 // pred_fallthru
      _
    // Predicated region
    $region38: #{tpu_custom_call.1} parent=1 // pred_check
      _
    $region39: #{tpu_custom_call.1} parent=1 // pred_check_branch
      %83 = sbr.rel (0) target = $region41
    $region40: #{tpu_custom_call.1} parent=1 // pred_region
      %85 = dma.done [#allocation6], 256
    $region41: #{tpu_custom_call.1} parent=1 // pred_fallthru
      _
    // Predicated region
    $region42: #{tpu_custom_call.1} parent=1 // pred_check
      _
    $region43: #{tpu_custom_call.1} parent=1 // pred_check_branch
      %87 = sbr.rel (0) target = $region45
    $region44: #{tpu_custom_call.1} parent=1 // pred_region
      %89 = dma.done [#allocation6], 512
    $region45: #{tpu_custom_call.1} parent=1 // pred_fallthru
      _
    // Predicated region
    $region46: #{tpu_custom_call.1} parent=1 // pred_check
      _
    $region47: #{tpu_custom_call.1} parent=1 // pred_check_branch
      %91 = sbr.rel (0) target = $region49
    $region48: #{tpu_custom_call.1} parent=1 // pred_region
      %93 = dma.done [#allocation9], 512
    $region49: #{tpu_custom_call.1} parent=1 // pred_fallthru
      _
    %v94 = vld [vmem:[#allocation2] sm:$0x3]
    %v95 = vld [vmem:[%s2] sm:$0xff]
    %v96 = vld [vmem:[%s2 + $0x8] sm:$0xff]
    %v97 = vld [vmem:[%s2 + $0x10] sm:$0xff]
    %v98 = vld [vmem:[%s2 + $0x18] sm:$0xff]
    %vm99 = vcmask 261120
    %v101 = vsel %vm99, %v94, 0
    %103 = vmatpush.msra.mxu0 0.0
    %104 = vmatpush.msra.mxu0 0.0
    %105 = vmatpush.msra.mxu0 0.0
    %106 = vmatpush.msra.mxu0 0.0
    %107 = vmatpush.msra.mxu0 0.0
    %108 = vmatpush.msra.mxu0 0.0
    %109 = vmatpush.msra.mxu0 0.0
    %110 = vmatpush.msra.mxu0 0.0
    %111 = vmatpush.msra.mxu0 0.0
    %112 = vmatpush.msra.mxu0 0.0
    %113 = vmatpush.msra.mxu0 0.0
    %114 = vmatpush.msra.mxu0 0.0
    %115 = vmatpush.msra.mxu0 %v98
    %116 = vmatpush.msra.mxu0 %v97
    %117 = vmatpush.msra.mxu0 %v96
    %118 = vmatpush.msra.mxu0 %v95
    %119 = vmatmul.f32.gmra.mxu0 %v101
    %v120 = vpop.f32.mrf.mxu0
    %v121 = vadd.f32 0.0, %v120
    %122 = vdwg.mxu0
    %v123 = vmul.f32 %v121, 0.5
    %v124 = vld [vmem:[#allocation5] sm:$0xff]
    %v125 = vld [vmem:[#allocation5 + $0x8] sm:$0xff]
    %v126 = vld [vmem:[#allocation7] sm:$0xff]
    %v127 = vld [vmem:[#allocation7 + $0x8] sm:$0xff]
    %v128 = vld [vmem:[#allocation7 + $0x10] sm:$0xff]
    %v129 = vld [vmem:[#allocation7 + $0x18] sm:$0xff]
    %v131 = vsel %vm99, %v124, 0
    %v134 = vsel %vm99, %v125, 0
    %136 = vmatpush.msra.mxu0 0.0
    %137 = vmatpush.msra.mxu0 0.0
    %138 = vmatpush.msra.mxu0 0.0
    %139 = vmatpush.msra.mxu0 0.0
    %140 = vmatpush.msra.mxu0 0.0
    %141 = vmatpush.msra.mxu0 0.0
    %142 = vmatpush.msra.mxu0 0.0
    %143 = vmatpush.msra.mxu0 0.0
    %144 = vmatpush.msra.mxu0 0.0
    %145 = vmatpush.msra.mxu0 0.0
    %146 = vmatpush.msra.mxu0 0.0
    %147 = vmatpush.msra.mxu0 0.0
    %148 = vmatpush.msra.mxu0 %v129
    %149 = vmatpush.msra.mxu0 %v128
    %150 = vmatpush.msra.mxu0 %v127
    %151 = vmatpush.msra.mxu0 %v126
    %152 = vmatmul.f32.gmra.mxu0 %v131
    %v153 = vpop.f32.mrf.mxu0
    %v154 = vadd.f32 0.0, %v153
    %155 = vmatmul.f32.gmra.mxu0 %v134
    %v156 = vpop.f32.mrf.mxu0
    %v157 = vadd.f32 0.0, %v156
    %158 = vdwg.mxu0
    %v160 = vrot.slane %v123, 1
    %v161 = vperm.slane %v123, 0
    %v162 = vperm.slane %v160, 0
    %v165 = vmul.f32 %v154, %v161
    %v166 = vmul.f32 %v157, %v162
    %v167 = vld [vmem:[%s6] sm:$0xff]
    %v168 = vld [vmem:[%s6 + $0x8] sm:$0xff]
    %v169 = vld [vmem:[%s6 + $0x10] sm:$0xff]
    %v170 = vld [vmem:[%s6 + $0x18] sm:$0xff]
    %v172 = vsel %vm99, %v165, 0
    %v175 = vsel %vm99, %v166, 0
    %177 = vmatpush.msra.mxu0 0.0
    %178 = vmatpush.msra.mxu0 0.0
    %179 = vmatpush.msra.mxu0 0.0
    %180 = vmatpush.msra.mxu0 0.0
    %181 = vmatpush.msra.mxu0 0.0
    %182 = vmatpush.msra.mxu0 0.0
    %183 = vmatpush.msra.mxu0 0.0
    %184 = vmatpush.msra.mxu0 0.0
    %185 = vmatpush.msra.mxu0 0.0
    %186 = vmatpush.msra.mxu0 0.0
    %187 = vmatpush.msra.mxu0 0.0
    %188 = vmatpush.msra.mxu0 0.0
    %189 = vmatpush.msra.mxu0 %v170
    %190 = vmatpush.msra.mxu0 %v169
    %191 = vmatpush.msra.mxu0 %v168
    %192 = vmatpush.msra.mxu0 %v167
    %193 = vmatmul.f32.gmra.mxu0 %v172
    %v194 = vpop.f32.mrf.mxu0
    %v195 = vadd.f32 0.0, %v194
    %196 = vmatmul.f32.gmra.mxu0 %v175
    %v197 = vpop.f32.mrf.mxu0
    %v198 = vadd.f32 0.0, %v197
    %199 = vdwg.mxu0
    %vm200 = vcmask 64512
    %v201 = vsel %vm200, %v195, -inf
    %v202 = vrot.slane %v201, 4
    %v203 = vmax.f32 %v201, %v202
    %v204 = vrot.slane %v203, 2
    %v205 = vmax.f32 %v203, %v204
    %v206 = vrot.slane %v205, 1
    %v207 = vmax.f32 %v205, %v206
    %v208 = vsel %vm200, %v198, -inf
    %v209 = vrot.slane %v208, 4
    %v210 = vmax.f32 %v208, %v209
    %v211 = vrot.slane %v210, 2
    %v212 = vmax.f32 %v210, %v211
    %v213 = vrot.slane %v212, 1
    %v214 = vmax.f32 %v212, %v213
    %v215 = vsub.f32 %v195, %v207
    %v216 = vsub.f32 %v198, %v214
    %v217 = vmul.f32 %v215, 1.442695
    %v218 = vpow.pop %v217
    %v219 = vmul.f32 %v216, 1.442695
    %v220 = vpow.pop %v219
    %v221 = vsel %vm200, %v218, 0.0
    %v222 = vrot.slane %v221, 4
    %v223 = vadd.f32 %v221, %v222
    %v224 = vrot.slane %v223, 2
    %v225 = vadd.f32 %v223, %v224
    %v226 = vrot.slane %v225, 1
    %v227 = vadd.f32 %v225, %v226
    %v228 = vsel %vm200, %v220, 0.0
    %v229 = vrot.slane %v228, 4
    %v230 = vadd.f32 %v228, %v229
    %v231 = vrot.slane %v230, 2
    %v232 = vadd.f32 %v230, %v231
    %v233 = vrot.slane %v232, 1
    %v234 = vadd.f32 %v232, %v233
    %v235 = vrcp.pop %v227
    %v236 = vrcp.pop %v234
    %v237 = vmul.f32 %v218, %v235
    %v238 = vmul.f32 %v220, %v236
    %v239 = vld [vmem:[%s7] sm:$0xff]
    %v241 = vsel %vm200, %v237, 0
    %v244 = vsel %vm200, %v238, 0
    %246 = vmatpush.msra.mxu0 0.0
    %247 = vmatpush.msra.mxu0 0.0
    %248 = vmatpush.msra.mxu0 0.0
    %249 = vmatpush.msra.mxu0 0.0
    %250 = vmatpush.msra.mxu0 0.0
    %251 = vmatpush.msra.mxu0 0.0
    %252 = vmatpush.msra.mxu0 0.0
    %253 = vmatpush.msra.mxu0 0.0
    %254 = vmatpush.msra.mxu0 0.0
    %255 = vmatpush.msra.mxu0 0.0
    %256 = vmatpush.msra.mxu0 0.0
    %257 = vmatpush.msra.mxu0 0.0
    %258 = vmatpush.msra.mxu0 0.0
    %259 = vmatpush.msra.mxu0 0.0
    %260 = vmatpush.msra.mxu0 0.0
    %261 = vmatpush.msra.mxu0 %v239
    %262 = vmatmul.f32.gmra.mxu0 %v241
    %v263 = vpop.f32.mrf.mxu0
    %v264 = vadd.f32 0.0, %v263
    %265 = vmatmul.f32.gmra.mxu0 %v244
    %v266 = vpop.f32.mrf.mxu0
    %v267 = vadd.f32 0.0, %v266
    %268 = vdwg.mxu0
    %271 = vrot.lane.b32.xlu0 %v154, 96
    %v272 = vpop.permute.xlu0 %271
    %273 = vrot.lane.b32.xlu0 %v157, 96
    %v274 = vpop.permute.xlu0 %273
    %v277 = vmul.f32 %v264, %v272
    %v278 = vmul.f32 %v267, %v274
    %v279 = vsel %vm99, %v277, 0.0
    %v280 = vrot.slane %v279, 4
    %v281 = vadd.f32 %v279, %v280
    %v282 = vrot.slane %v281, 2
    %v283 = vadd.f32 %v281, %v282
    %v284 = vrot.slane %v283, 1
    %v285 = vadd.f32 %v283, %v284
    %v286 = vsel %vm99, %v278, 0.0
    %v287 = vrot.slane %v286, 4
    %v288 = vadd.f32 %v286, %v287
    %v289 = vrot.slane %v288, 2
    %v290 = vadd.f32 %v288, %v289
    %v291 = vrot.slane %v290, 1
    %v292 = vadd.f32 %v290, %v291
    %v293 = vld [vmem:[#allocation8] sm:$0xff]
    %v294 = vld [vmem:[#allocation8 + $0x8] sm:$0xff]
    %v295 = vld [vmem:[#allocation8 + $0x10] sm:$0xff]
    %v296 = vld [vmem:[#allocation8 + $0x18] sm:$0xff]
    %v297 = vld [vmem:[%s5] sm:$0x1]
    %v299 = vperm.slane %v297, 0
    %vm303 = vcmask 1041409
    %v304 = vsel %vm303, %v292, %v285
    %v305 = vsel %vm99, %v304, 0
    %307 = vmatpush.msra.mxu0 0.0
    %308 = vmatpush.msra.mxu0 0.0
    %309 = vmatpush.msra.mxu0 0.0
    %310 = vmatpush.msra.mxu0 0.0
    %311 = vmatpush.msra.mxu0 0.0
    %312 = vmatpush.msra.mxu0 0.0
    %313 = vmatpush.msra.mxu0 0.0
    %314 = vmatpush.msra.mxu0 0.0
    %315 = vmatpush.msra.mxu0 0.0
    %316 = vmatpush.msra.mxu0 0.0
    %317 = vmatpush.msra.mxu0 0.0
    %318 = vmatpush.msra.mxu0 0.0
    %319 = vmatpush.msra.mxu0 %v296
    %320 = vmatpush.msra.mxu0 %v295
    %321 = vmatpush.msra.mxu0 %v294
    %322 = vmatpush.msra.mxu0 %v293
    %323 = vmatmul.f32.gmra.mxu0 %v305
    %v324 = vpop.f32.mrf.mxu0
    %v325 = vadd.f32 %v299, %v324
    %326 = vdwg.mxu0
    %vm327 = vcmask 254976
    %328 = vst.msk [vmem:[#allocation10] sm:$0x3] %vm327, %v325
    %v329 = vsel %vm200, %v237, 0.0
    %330 = vadd.xlane.f32.xlu0 %v329
    %v331 = vpop.xlane.xlu0 %330
    %v332 = vsel %vm200, %v238, 0.0
    %333 = vadd.xlane.f32.xlu0 %v332
    %v334 = vpop.xlane.xlu0 %333
    %v335 = vrcp.pop 8.0
    %v336 = vmul.f32 8.0, %v335
    %v337 = vsub.f32 1.0, %v336
    %v338 = vmul.f32 %v335, %v337
    %v339 = vadd.f32 %v335, %v338
    %vm340 = vweird.f32 %v335
    %v341 = vsel %vm340, %v335, %v339
    %v342 = vmul.f32 %v331, %v341
    %v343 = vmul.f32 %v334, %v341
    %v346 = vlaneseq
    %v347 = vand.u32 %v346, 127
    %v348 = vperm.slane %v342, %v347
    %v349 = vperm.slane %v343, %v347
    %v350 = vsel %vm303, %v349, %v348
    %vm352 = vcmask 58368
    %353 = vst.msk [vmem:[#allocation11] sm:$0x3] %vm352, %v350
    // Predicated region
    $region50: #{tpu_custom_call.1} parent=1 // pred_check
      _
    $region51: #{tpu_custom_call.1} parent=1 // pred_check_branch
      %355 = sbr.rel (0) target = $region53
    $region52: #{tpu_custom_call.1} parent=1 // pred_region
      %357 = vsyncadd [#allocation4], 0
      %s359 = sshll.u32 [#allocation10], 4
      %s360 = int_to_ptr.vmem [resolvable:$true] %s359
      %s361 = sshll.u32 %s8, 4
      %s362 = int_to_ptr.hbm [resolvable:$true] %s361
      %364 = dma.vmem_to_hbm [thread:$0]  %s360, 32, %s362, [#allocation4]
    $region53: #{tpu_custom_call.1} parent=1 // pred_fallthru
      _
    // Predicated region
    $region54: #{tpu_custom_call.1} parent=1 // pred_check
      _
    $region55: #{tpu_custom_call.1} parent=1 // pred_check_branch
      %366 = sbr.rel (0) target = $region57
    $region56: #{tpu_custom_call.1} parent=1 // pred_region
      %368 = vsyncadd [#allocation12], 0
      %s370 = sshll.u32 [#allocation11], 4
      %s371 = int_to_ptr.vmem [resolvable:$true] %s370
      %s372 = sshll.u32 %s9, 4
      %s373 = int_to_ptr.hbm [resolvable:$true] %s372
      %375 = dma.vmem_to_hbm [thread:$0]  %s371, 32, %s373, [#allocation12]
    $region57: #{tpu_custom_call.1} parent=1 // pred_fallthru
      _
    // Predicated region
    $region58: #{tpu_custom_call.1} parent=1 // pred_check
      _
    $region59: #{tpu_custom_call.1} parent=1 // pred_check_branch
      %377 = sbr.rel (0) target = $region61
    $region60: #{tpu_custom_call.1} parent=1 // pred_region
      %379 = dma.done [#allocation4], 32
    $region61: #{tpu_custom_call.1} parent=1 // pred_fallthru
      _
    // Predicated region
    $region62: #{tpu_custom_call.1} parent=1 // pred_check
      _
    $region63: #{tpu_custom_call.1} parent=1 // pred_check_branch
      %381 = sbr.rel (0) target = $region65
    $region64: #{tpu_custom_call.1} parent=1 // pred_region
      %383 = dma.done [#allocation12], 32
    $region65: #{tpu_custom_call.1} parent=1 // pred_fallthru
      _
    %384 = vsyncpa [#allocation3], 1
    %385 = vsyncpa [#allocation6], 1
    %386 = vsyncpa [#allocation9], 1
    %387 = vsyncpa [#allocation4], 1
    %388 = vsyncpa [#allocation12], 1

</llo_original>
